<compile_context>
chip_gen: v6e
topology: v6e:2x2x1
jax: 0.10.0
libtpu: 0.0.40
codegen_flags: <defaults>
</compile_context>

<pallas_src>
import math
from functools import partial

import jax
import jax.numpy as jnp
from jax.experimental import pallas as pl
from jax.experimental.pallas import tpu as pltpu


# ------------------------------- tiling helpers --------------------------------
def _pick_bm(M):
    """Largest row tile (<=512) that divides M; falls back to a single full block."""
    for bm in (512, 256, 128, 64, 32, 16, 8):
        if M % bm == 0:
            return bm
    return M


def _pick_tk(K):
    """K (contraction) tile: 512/256/128 when they divide K, else the full K."""
    for tk in (512, 256, 128):
        if K > tk and K % tk == 0:
            return tk
    return K


# --------------------- fused linear (+bias, act, residual+LN) -------------------
def _linear_kernel(*refs, activation, fuse_ln, eps):
    if fuse_ln:
        x_ref, w_ref, b_ref, res_ref, g_ref, be_ref, o_ref, acc_ref = refs
    else:
        x_ref, w_ref, b_ref, o_ref, acc_ref = refs
        res_ref = g_ref = be_ref = None

    @pl.when(pl.program_id(1) == 0)
    def _init():
        acc_ref[...] = jnp.zeros_like(acc_ref)

    # bf16 x bf16 -> fp32 accumulate on the MXU
    acc_ref[...] += jnp.dot(x_ref[...], w_ref[...], preferred_element_type=jnp.float32)

    @pl.when(pl.program_id(1) == pl.num_programs(1) - 1)
    def _finalize():
        y = acc_ref[...] + b_ref[...]
        if activation == "gelu":
            # TODO(synk): tanh-approx GELU (HF BERT default is exact-erf GELU; diff < 1e-3)
            c = math.sqrt(2.0 / math.pi)
            y = 0.5 * y * (1.0 + jnp.tanh(c * (y + 0.044715 * y * y * y)))
        elif activation == "tanh":
            y = jnp.tanh(y)
        if fuse_ln:
            y = y + res_ref[...].astype(jnp.float32)
            mean = jnp.mean(y, axis=-1, keepdims=True)
            yc = y - mean
            var = jnp.mean(yc * yc, axis=-1, keepdims=True)
            y = yc * jax.lax.rsqrt(var + eps) * g_ref[...] + be_ref[...]
        o_ref[...] = y.astype(o_ref.dtype)


def linear(x, w, b, *, activation="none", residual=None, ln_gamma=None, ln_beta=None,
           eps=1e-12, out_dtype=jnp.bfloat16):
    """y = act(x @ w + b); optionally y = LayerNorm(residual + y)."""
    M, K = x.shape
    N = w.shape[1]
    bm = _pick_bm(M)
    tk = _pick_tk(K)
    nm, nk = M // bm, K // tk
    fuse_ln = residual is not None

    in_specs = [
        pl.BlockSpec((bm, tk), lambda i, k: (i, k)),
        pl.BlockSpec((tk, N), lambda i, k: (k, 0)),
        pl.BlockSpec((1, N), lambda i, k: (0, 0)),
    ]
    inputs = [x, w, b.reshape(1, N).astype(jnp.float32)]
    if fuse_ln:
        in_specs += [
            pl.BlockSpec((bm, N), lambda i, k: (i, 0)),
            pl.BlockSpec((1, N), lambda i, k: (0, 0)),
            pl.BlockSpec((1, N), lambda i, k: (0, 0)),
        ]
        inputs += [residual,
                   ln_gamma.reshape(1, N).astype(jnp.float32),
                   ln_beta.reshape(1, N).astype(jnp.float32)]

    return pl.pallas_call(
        partial(_linear_kernel, activation=activation, fuse_ln=fuse_ln, eps=eps),
        out_shape=jax.ShapeDtypeStruct((M, N), out_dtype),
        grid=(nm, nk),
        in_specs=in_specs,
        out_specs=pl.BlockSpec((bm, N), lambda i, k: (i, 0)),
        scratch_shapes=[pltpu.VMEM((bm, N), jnp.float32)],
        compiler_params=pltpu.CompilerParams(
            dimension_semantics=("parallel", "arbitrary")),
    )(*inputs)


# ------------------------------- layernorm kernel -------------------------------
def _layernorm_kernel(x_ref, g_ref, b_ref, o_ref, *, eps):
    x = x_ref[...].astype(jnp.float32)
    mean = jnp.mean(x, axis=-1, keepdims=True)
    xc = x - mean
    var = jnp.mean(xc * xc, axis=-1, keepdims=True)
    inv = jax.lax.rsqrt(var + eps)
    o_ref[...] = (xc * inv * g_ref[...] + b_ref[...]).astype(o_ref.dtype)


def layernorm(x, gamma, beta, eps=1e-12, out_dtype=jnp.bfloat16):
    M, H = x.shape
    bm = _pick_bm(M)
    return pl.pallas_call(
        partial(_layernorm_kernel, eps=eps),
        out_shape=jax.ShapeDtypeStruct((M, H), out_dtype),
        grid=(M // bm,),
        in_specs=[
            pl.BlockSpec((bm, H), lambda i: (i, 0)),
            pl.BlockSpec((1, H), lambda i: (0, 0)),
            pl.BlockSpec((1, H), lambda i: (0, 0)),
        ],
        out_specs=pl.BlockSpec((bm, H), lambda i: (i, 0)),
        compiler_params=pltpu.CompilerParams(dimension_semantics=("parallel",)),
    )(x, gamma.reshape(1, H).astype(jnp.float32), beta.reshape(1, H).astype(jnp.float32))


# ------------------------------- attention kernel -------------------------------
# Operates per batch element on the fused (S, 3H) QKV slab; heads are contiguous lane
# slices of the hidden axis, so no split_heads / merge_heads transposes are needed and
# the output store is lane-dense (S, H).
def _attention_kernel(qkv_ref, bias_ref, o_ref, *, n_heads, dh, scale):
    H = n_heads * dh
    bias = bias_ref[...]                                  # (1, S) additive mask bias (f32)
    outs = []
    for h in range(n_heads):
        qh = qkv_ref[:, h * dh:(h + 1) * dh]              # (S, dh) bf16
        kh = qkv_ref[:, H + h * dh:H + (h + 1) * dh]
        vh = qkv_ref[:, 2 * H + h * dh:2 * H + (h + 1) * dh]
        s = jnp.dot(qh, kh.T, preferred_element_type=jnp.float32) * scale + bias
        m = jnp.max(s, axis=-1, keepdims=True)
        p = jnp.exp(s - m)
        l = jnp.sum(p, axis=-1, keepdims=True)
        p = p * pl.reciprocal(l, approx=True)
        outs.append(jnp.dot(p.astype(vh.dtype), vh, preferred_element_type=jnp.float32))
    o_ref[...] = jnp.concatenate(outs, axis=-1).astype(o_ref.dtype)


def attention(qkv, mask_bias, *, n_heads):
    B, S, H3 = qkv.shape
    H = H3 // 3
    dh = H // n_heads
    return pl.pallas_call(
        partial(_attention_kernel, n_heads=n_heads, dh=dh, scale=1.0 / math.sqrt(dh)),
        out_shape=jax.ShapeDtypeStruct((B, S, H), qkv.dtype),
        grid=(B,),
        in_specs=[
            pl.BlockSpec((None, S, H3), lambda b: (b, 0, 0)),   # squeezed batch dim
            pl.BlockSpec((None, 1, S), lambda b: (b, 0, 0)),
        ],
        out_specs=pl.BlockSpec((None, S, H), lambda b: (b, 0, 0)),
        compiler_params=pltpu.CompilerParams(dimension_semantics=("parallel",)),
    )(qkv, mask_bias)


# ---------------- fused pooler + classifier + cross-entropy head ----------------
def _head_kernel(cls_ref, pw_ref, pb_ref, cw_ref, cb_ref, lab_ref, logits_ref, loss_ref):
    x = cls_ref[...]                                                  # (B, H) bf16
    pooled = jnp.tanh(jnp.dot(x, pw_ref[...],
                              preferred_element_type=jnp.float32) + pb_ref[...])
    logits = jnp.dot(pooled, cw_ref[...].astype(jnp.float32),
                     preferred_element_type=jnp.float32) + cb_ref[...]
    logits_ref[...] = logits
    B, L = logits.shape
    m = jnp.max(logits, axis=-1, keepdims=True)
    z = logits - m
    lse = jnp.log(jnp.sum(jnp.exp(z), axis=-1, keepdims=True))        # (B, 1)
    ids = jax.lax.broadcasted_iota(jnp.int32, (B, L), 1)
    onehot = (ids == lab_ref[...]).astype(jnp.float32)
    picked = jnp.sum(onehot * z, axis=-1, keepdims=True)              # (B, 1)
    loss_ref[...] = jnp.sum(lse - picked, axis=0, keepdims=True) / float(B)


def classify_head(cls_tok, pool_w, pool_b, cls_w, cls_b, labels):
    B, H = cls_tok.shape
    L = cls_w.shape[1]
    logits, loss = pl.pallas_call(
        _head_kernel,
        out_shape=(jax.ShapeDtypeStruct((B, L), jnp.float32),
                   jax.ShapeDtypeStruct((1, 1), jnp.float32)),
    )(cls_tok, pool_w, pool_b.reshape(1, H).astype(jnp.float32),
      cls_w, cls_b.reshape(1, L).astype(jnp.float32),
      labels.reshape(B, 1).astype(jnp.int32))
    return logits, loss[0, 0]


# --------------------------------- model glue -----------------------------------
def init_params(key, *, vocab, hidden, n_layers, n_heads, intermediate, max_pos, num_labels):
    keys = iter(jax.random.split(key, 8 + n_layers * 8))

    def w(shape):
        return (jax.random.normal(next(keys), shape, jnp.float32) * 0.02).astype(jnp.bfloat16)

    zeros = lambda n: jnp.zeros((n,), jnp.float32)
    ones = lambda n: jnp.ones((n,), jnp.float32)

    params = {
        "word_emb": w((vocab, hidden)),
        "pos_emb": w((max_pos, hidden)),
        "type_emb": w((2, hidden)),
        "emb_ln_g": ones(hidden), "emb_ln_b": zeros(hidden),
        "pool_w": w((hidden, hidden)), "pool_b": zeros(hidden),
        "cls_w": w((hidden, num_labels)), "cls_b": zeros(num_labels),
        "layers": [],
    }
    for _ in range(n_layers):
        params["layers"].append({
            "w_qkv": w((hidden, 3 * hidden)), "b_qkv": zeros(3 * hidden),  # [Wq|Wk|Wv] fused
            "wo": w((hidden, hidden)), "bo": zeros(hidden),
            "ln1_g": ones(hidden), "ln1_b": zeros(hidden),
            "w1": w((hidden, intermediate)), "b1": zeros(intermediate),
            "w2": w((intermediate, hidden)), "b2": zeros(hidden),
            "ln2_g": ones(hidden), "ln2_b": zeros(hidden),
        })
    return params


def bert_baseline_forward(params, texts, labels, *, n_heads):
    """Mirrors BertBaseline.forward: returns (loss, {'predict_logits': logits}, {})."""
    B, S = texts.shape
    H = params["word_emb"].shape[1]

    attention_mask = texts > 0                                # same as module: texts > 0
    mask_bias = jnp.where(attention_mask, 0.0, -1e9).astype(jnp.float32).reshape(B, 1, S)

    # Embedding gather is glue (data-dependent lookup), kept in plain JAX.
    emb = (jnp.take(params["word_emb"], texts, axis=0)
           + params["pos_emb"][None, :S, :]
           + params["type_emb"][None, 0:1, :])                # token_type_ids=None -> type 0
    h = layernorm(emb.reshape(B * S, H), params["emb_ln_g"], params["emb_ln_b"])

    for lp in params["layers"]:
        qkv = linear(h, lp["w_qkv"], lp["b_qkv"])                         # (B*S, 3H)
        ctx = attention(qkv.reshape(B, S, 3 * H), mask_bias, n_heads=n_heads)
        h = linear(ctx.reshape(B * S, H), lp["wo"], lp["bo"],             # attn-out + res + LN
                   residual=h, ln_gamma=lp["ln1_g"], ln_beta=lp["ln1_b"])
        ff = linear(h, lp["w1"], lp["b1"], activation="gelu")             # FFN up + GELU
        h = linear(ff, lp["w2"], lp["b2"],                                # FFN down + res + LN
                   residual=h, ln_gamma=lp["ln2_g"], ln_beta=lp["ln2_b"])
        # TODO(synk): dropout omitted (eval/inference semantics; identity when p=0)

    cls_tok = h.reshape(B, S, H)[:, 0, :]                                 # [CLS]
    logits, loss = classify_head(cls_tok, params["pool_w"], params["pool_b"],
                                 params["cls_w"], params["cls_b"], labels)

    output_dict = {"predict_logits": logits}
    monitors = {}
    return loss, output_dict, monitors


if __name__ == "__main__":
    B, S = 2, 8
    VOCAB, HIDDEN, N_LAYERS, N_HEADS, INTER, MAX_POS, NUM_LABELS = 100, 32, 2, 4, 64, 16, 3

    root = jax.random.PRNGKey(0)
    k_param, k_text, k_label = jax.random.split(root, 3)

    params = init_params(k_param, vocab=VOCAB, hidden=HIDDEN, n_layers=N_LAYERS,
                         n_heads=N_HEADS, intermediate=INTER, max_pos=MAX_POS,
                         num_labels=NUM_LABELS)

    texts = jax.random.randint(k_text, (B, S), 1, VOCAB, dtype=jnp.int32)
    texts = texts.at[:, -2:].set(0)                          # trailing padding -> mask exercised
    labels = jax.random.randint(k_label, (B,), 0, NUM_LABELS, dtype=jnp.int32)

    loss, output_dict, monitors = bert_baseline_forward(params, texts, labels, n_heads=N_HEADS)
    jax.block_until_ready((loss, output_dict["predict_logits"]))
    assert output_dict["predict_logits"].shape == (B, NUM_LABELS)
    assert loss.shape == ()
    print("KERNEL_OK")
</pallas_src>

<mosaic_0001>
module attributes {stable_mosaic.version = 11 : i64} {
  func.func @_layernorm_kernel(%arg0: i32, %arg1: memref<16x32xbf16, #tpu.memory_space<vmem>>, %arg2: memref<1x32xf32, #tpu.memory_space<vmem>>, %arg3: memref<1x32xf32, #tpu.memory_space<vmem>>, %arg4: memref<16x32xbf16, #tpu.memory_space<vmem>>) attributes {dimension_semantics = [#tpu.dimension_semantics<parallel>], iteration_bounds = array<i64: 1>, scalar_prefetch = 0 : i64, scratch_operands = 0 : i64, tpu.core_type = #tpu.core_type<tc>, window_params = [{transform_indices = @transform_0, window_bounds = array<i64: 16, 32>}, {pipeline_mode = #tpu.pipeline_mode<synchronous>, transform_indices = @transform_1, window_bounds = array<i64: 1, 32>}, {pipeline_mode = #tpu.pipeline_mode<synchronous>, transform_indices = @transform_2, window_bounds = array<i64: 1, 32>}, {transform_indices = @transform_3, window_bounds = array<i64: 16, 32>}]} {
    %c0 = arith.constant 0 : index
    %c0_0 = arith.constant 0 : index
    %0 = vector.load %arg1[%c0, %c0_0] : memref<16x32xbf16, #tpu.memory_space<vmem>>, vector<16x32xbf16>
    %1 = arith.extf %0 : vector<16x32xbf16> to vector<16x32xf32>
    %cst = arith.constant dense<0.000000e+00> : vector<16xf32>
    %2 = vector.multi_reduction <add>, %1, %cst [1] : vector<16x32xf32> to vector<16xf32>
    %3 = vector.shape_cast %2 : vector<16xf32> to vector<16x1xf32>
    %cst_1 = arith.constant 3.200000e+01 : f32
    %4 = vector.broadcast %cst_1 : f32 to vector<16x1xf32>
    %5 = arith.divf %3, %4 : vector<16x1xf32>
    %6 = vector.broadcast %5 : vector<16x1xf32> to vector<16x32xf32>
    %7 = arith.subf %1, %6 : vector<16x32xf32>
    %8 = arith.mulf %7, %7 : vector<16x32xf32>
    %cst_2 = arith.constant dense<0.000000e+00> : vector<16xf32>
    %9 = vector.multi_reduction <add>, %8, %cst_2 [1] : vector<16x32xf32> to vector<16xf32>
    %10 = vector.shape_cast %9 : vector<16xf32> to vector<16x1xf32>
    %cst_3 = arith.constant 3.200000e+01 : f32
    %11 = vector.broadcast %cst_3 : f32 to vector<16x1xf32>
    %12 = arith.divf %10, %11 : vector<16x1xf32>
    %cst_4 = arith.constant 9.99999996E-13 : f32
    %13 = vector.broadcast %cst_4 : f32 to vector<16x1xf32>
    %14 = arith.addf %12, %13 : vector<16x1xf32>
    %15 = math.rsqrt %14 : vector<16x1xf32>
    %16 = vector.broadcast %15 : vector<16x1xf32> to vector<16x32xf32>
    %17 = arith.mulf %7, %16 : vector<16x32xf32>
    %c0_5 = arith.constant 0 : index
    %c0_6 = arith.constant 0 : index
    %18 = vector.load %arg2[%c0_5, %c0_6] : memref<1x32xf32, #tpu.memory_space<vmem>>, vector<1x32xf32>
    %19 = vector.broadcast %18 : vector<1x32xf32> to vector<16x32xf32>
    %20 = arith.mulf %17, %19 : vector<16x32xf32>
    %c0_7 = arith.constant 0 : index
    %c0_8 = arith.constant 0 : index
    %21 = vector.load %arg3[%c0_7, %c0_8] : memref<1x32xf32, #tpu.memory_space<vmem>>, vector<1x32xf32>
    %22 = vector.broadcast %21 : vector<1x32xf32> to vector<16x32xf32>
    %23 = arith.addf %20, %22 : vector<16x32xf32>
    %24 = arith.truncf %23 : vector<16x32xf32> to vector<16x32xbf16>
    %c0_9 = arith.constant 0 : index
    %c0_10 = arith.constant 0 : index
    %25 = vector.load %arg4[%c0_9, %c0_10] : memref<16x32xbf16, #tpu.memory_space<vmem>>, vector<16x32xbf16>
    tpu.vector_store %arg4[%c0_9, %c0_10], %24 {strides = array<i32>} : memref<16x32xbf16, #tpu.memory_space<vmem>>, vector<16x32xbf16>,
    return
  }
  func.func @transform_0(%arg0: i32) -> (i32, i32) {
    %c0_i32 = arith.constant 0 : i32
    %c0_i32_0 = arith.constant 0 : i32
    return %arg0, %c0_i32 : i32, i32
  }
  func.func @transform_1(%arg0: i32) -> (i32, i32) {
    %c0_i32 = arith.constant 0 : i32
    %c0_i32_0 = arith.constant 0 : i32
    %c0_i32_1 = arith.constant 0 : i32
    return %c0_i32, %c0_i32_0 : i32, i32
  }
  func.func @transform_2(%arg0: i32) -> (i32, i32) {
    %c0_i32 = arith.constant 0 : i32
    %c0_i32_0 = arith.constant 0 : i32
    %c0_i32_1 = arith.constant 0 : i32
    return %c0_i32, %c0_i32_0 : i32, i32
  }
  func.func @transform_3(%arg0: i32) -> (i32, i32) {
    %c0_i32 = arith.constant 0 : i32
    %c0_i32_0 = arith.constant 0 : i32
    return %arg0, %c0_i32 : i32, i32
  }
}

</mosaic_0001>

<llo_original>
// kernel: tpu_custom_call.1
$region0: #{tpu_custom_call.1}
  #allocation0 [shape = 'u32[]', space=smem, size = 0x4, offset = 0x4, fixed_abs, tag = 'smem constant byte address 0x4 - core index']
  #allocation1 [shape = 'u32[144,128]{1,0:T(1,128)}', space=vmem, size = 0x12000, scoped, tag = 'internal scratch']
  %s0 = inlined_call_operand.hbm [shape: bf16[16,32], index: 0, kind: input, shape index: {}]
  %s1 = inlined_call_operand.vmem [shape: f32[1,32], index: 1, kind: input, shape index: {}]
  %s2 = inlined_call_operand.vmem [shape: f32[1,32], index: 2, kind: input, shape index: {}]
  %s3 = inlined_call_operand.hbm [shape: bf16[16,32], index: 3, kind: output, shape index: {}]
  %s4 = sld [smem:[#allocation0]]
  $region26: #{tpu_custom_call.1} parent=0
    _
  %s6 = ssub.s32 1, %s4
  %s7 = scalar_select 0, %s6, %s4
  $region1: #{tpu_custom_call.1} parent=0
    #allocation2 [shape = 'u8[4096]{0}', space=vmem, size = 0x1000, scoped, tag = 'input window, operand 0, single buffered']
    #allocation3 [shape = 's32[1]{0}', space=sflag, size = 0x4, scoped, tag = 'scoped memory for tpu_custom_call.1']
    #allocation4 [shape = 's32[1]{0}', space=sflag, size = 0x4, scoped, tag = 'scoped memory for tpu_custom_call.1']
    #allocation5 [shape = 'u8[4096]{0}', space=vmem, size = 0x1000, scoped, tag = 'output window, operand 0, single buffered']
    %8 = vsyncpa [#allocation3], 0
    %9 = vsyncpa [#allocation4], 0
    // Predicated region
    $region2: #{tpu_custom_call.1} parent=1 // pred_check
      _
    $region3: #{tpu_custom_call.1} parent=1 // pred_check_branch
      %11 = sbr.rel (0) target = $region5
    $region4: #{tpu_custom_call.1} parent=1 // pred_region
      %s13 = ssub.s32 128, 128
      %14 = vsyncadd [#allocation3], %s13
      %s15 = sshll.u32 [#allocation2], 4
      %s16 = int_to_ptr.vmem [resolvable:$true] %s15
      %21 = dma.hbm_to_vmem [thread:$0]  %s0, 128, %s16, [#allocation3], 64, 64, 4
    $region5: #{tpu_custom_call.1} parent=1 // pred_fallthru
      _
    // Predicated region
    $region6: #{tpu_custom_call.1} parent=1 // pred_check
      _
    $region7: #{tpu_custom_call.1} parent=1 // pred_check_branch
      %23 = sbr.rel (0) target = $region9
    $region8: #{tpu_custom_call.1} parent=1 // pred_region
      _
    $region9: #{tpu_custom_call.1} parent=1 // pred_fallthru
      _
    // Predicated region
    $region10: #{tpu_custom_call.1} parent=1 // pred_check
      _
    $region11: #{tpu_custom_call.1} parent=1 // pred_check_branch
      %25 = sbr.rel (0) target = $region13
    $region12: #{tpu_custom_call.1} parent=1 // pred_region
      _
    $region13: #{tpu_custom_call.1} parent=1 // pred_fallthru
      _
    // Predicated region
    $region14: #{tpu_custom_call.1} parent=1 // pred_check
      _
    $region15: #{tpu_custom_call.1} parent=1 // pred_check_branch
      %27 = sbr.rel (0) target = $region17
    $region16: #{tpu_custom_call.1} parent=1 // pred_region
      %28 = dma.done [#allocation3], 128
    $region17: #{tpu_custom_call.1} parent=1 // pred_fallthru
      _
    %v29 = vld [vmem:[#allocation2] sm:$0xf]
    %v30 = vld [vmem:[#allocation2 + $0x4] sm:$0xf]
    %v31 = vunpack.c.l.bf16 %v29
    %v32 = vunpack.c.l.bf16 %v30
    %vm33 = vcmask 261120
    %v34 = vsel %vm33, %v31, 0.0
    %35 = vadd.xlane.f32.xlu0 %v34
    %v36 = vpop.xlane.xlu0 %35
    %v37 = vsel %vm33, %v32, 0.0
    %38 = vadd.xlane.f32.xlu0 %v37
    %v39 = vpop.xlane.xlu0 %38
    %v40 = vrcp.pop 32.0
    %v41 = vmul.f32 %v36, %v40
    %v42 = vmul.f32 %v39, %v40
    %v43 = vsub.f32 %v31, %v41
    %v44 = vsub.f32 %v32, %v42
    %v45 = vmul.f32 %v43, %v43
    %v46 = vmul.f32 %v44, %v44
    %v47 = vsel %vm33, %v45, 0.0
    %48 = vadd.xlane.f32.xlu0 %v47
    %v49 = vpop.xlane.xlu0 %48
    %v50 = vsel %vm33, %v46, 0.0
    %51 = vadd.xlane.f32.xlu0 %v50
    %v52 = vpop.xlane.xlu0 %51
    %v53 = vmul.f32 %v49, %v40
    %v54 = vmul.f32 %v52, %v40
    %v55 = vadd.f32 %v53, 1e-12
    %v56 = vadd.f32 %v54, 1e-12
    %v57 = vrsqrt.pop %v55
    %v58 = vrsqrt.pop %v56
    %v59 = vmul.f32 %v43, %v57
    %v60 = vmul.f32 %v44, %v58
    %v61 = vld [vmem:[%s1] sm:$0x1]
    %v63 = vlaneseq
    %v64 = vshrl.u32 %v63, 7
    %v65 = vsub.s32 0, %v64
    %v66 = vrot.slane %v61, %v65
    %v68 = vmul.f32 %v59, %v66
    %v69 = vmul.f32 %v60, %v66
    %v70 = vld [vmem:[%s2] sm:$0x1]
    %v72 = vlaneseq
    %v73 = vshrl.u32 %v72, 7
    %v74 = vsub.s32 0, %v73
    %v75 = vrot.slane %v70, %v74
    %v77 = vadd.f32 %v68, %v75
    %v78 = vadd.f32 %v69, %v75
    %v79 = vpack.c.bf16 %v78, %v77
    %v81 = vunpack.c.l.b16 %v79
    %v82 = vunpack.c.h.b16 %v79
    %v83 = vpack.c.b16 %v81, %v81
    %v84 = vpack.c.b16 %v82, %v82
    %vm87 = vcmask 257024
    %88 = vst.msk [vmem:[#allocation5] sm:$0xf] %vm87, %v83
    %89 = vst.msk [vmem:[#allocation5 + $0x4] sm:$0xf] %vm87, %v84
    // Predicated region
    $region18: #{tpu_custom_call.1} parent=1 // pred_check
      _
    $region19: #{tpu_custom_call.1} parent=1 // pred_check_branch
      %91 = sbr.rel (0) target = $region21
    $region20: #{tpu_custom_call.1} parent=1 // pred_region
      %s93 = ssub.s32 128, 128
      %94 = vsyncadd [#allocation4], %s93
      %s95 = sshll.u32 [#allocation5], 4
      %s96 = int_to_ptr.vmem [resolvable:$true] %s95
      %101 = dma.vmem_to_hbm [thread:$0]  %s96, 128, %s3, [#allocation4], 64, 64, 4
    $region21: #{tpu_custom_call.1} parent=1 // pred_fallthru
      _
    // Predicated region
    $region22: #{tpu_custom_call.1} parent=1 // pred_check
      _
    $region23: #{tpu_custom_call.1} parent=1 // pred_check_branch
      %103 = sbr.rel (0) target = $region25
    $region24: #{tpu_custom_call.1} parent=1 // pred_region
      %104 = dma.done [#allocation4], 128
    $region25: #{tpu_custom_call.1} parent=1 // pred_fallthru
      _
    %105 = vsyncpa [#allocation3], 1
    %106 = vsyncpa [#allocation4], 1

</llo_original>
